<compile_context>
chip_gen: v5e
topology: v5e:2x2
jax: 0.10.0
libtpu: 0.0.40
codegen_flags: <defaults>
</compile_context>

<pallas_src>
import functools

import jax
import jax.numpy as jnp
from jax.experimental import pallas as pl
from jax.experimental.pallas import tpu as pltpu

LANE = 128      # vreg lane width
SUBLANE = 8     # vreg sublane count (f32)


def _round_up(x, m):
    return (x + m - 1) // m * m


def _pad2(x, rows, cols, dtype):
    r, c = x.shape
    return jnp.pad(x.astype(jnp.float32),
                   ((0, rows - r), (0, cols - c))).astype(dtype)


# ----------------------------- Pallas kernel ------------------------------ #
def _rgcn_chain_kernel(adj1_ref, x_ref, w1_ref, adj2_ref, w2_ref, bias_ref,
                       o_ref, hw_ref, *, hid_pad, out_pad):
    """Fused 2-layer GraphConv chain with layer-2 destination-row tiling.

    grid = (chain, row_tile).  At row tile 0 the layer-1 activation and the
    layer-2 feature product  HW = relu((A1 @ X) @ W1 + b1) @ W2  are computed
    once per chain and kept resident in a bf16 VMEM scratch; every row tile
    then only does  Y_tile = A2_tile @ HW + b2  (lane-dense stores).
    All dots use bf16 operands with f32 MXU accumulation; bias + ReLU in f32.
    """
    r = pl.program_id(1)

    @pl.when(r == 0)
    def _():
        b1 = bias_ref[0][0:1, :hid_pad]                          # f32
        # Layer 1: (A1 @ X) @ W1   (F_in <= hid -> contract through A first)
        ax = jnp.dot(adj1_ref[0], x_ref[0],
                     preferred_element_type=jnp.float32)
        h = jnp.dot(ax.astype(jnp.bfloat16), w1_ref[0],
                    preferred_element_type=jnp.float32) + b1
        h = jnp.maximum(h, 0.0).astype(jnp.bfloat16)             # ReLU in f32
        # Precompute H @ W2 once per chain; resident for all row tiles.
        hw_ref[...] = jnp.dot(h, w2_ref[0],
                              preferred_element_type=jnp.float32
                              ).astype(jnp.bfloat16)

    b2 = bias_ref[0][1:2, :out_pad]                              # f32
    y = jnp.dot(adj2_ref[0], hw_ref[...],
                preferred_element_type=jnp.float32) + b2
    o_ref[0] = y.astype(o_ref.dtype)


# ------------------------------ JAX wrapper -------------------------------- #
def normalize_adj(adj_src_dst):
    """adj_src_dst: [N_src, N_dst] 0/1 edges. Returns [N_dst, N_src] norm adj."""
    adj = adj_src_dst.astype(jnp.float32)
    deg_out = adj.sum(axis=1)            # out-degree of src nodes
    deg_in = adj.sum(axis=0)             # in-degree of dst nodes
    norm_src = jnp.where(deg_out > 0, deg_out ** -0.5, 0.0)
    norm_dst = jnp.where(deg_in > 0, deg_in ** -0.5, 0.0)
    return norm_dst[:, None] * adj.T * norm_src[None, :]


def prepare_inputs(adj_bel, adj_inc, feats, params):
    """One-time setup (NOT the per-step hot path): normalize, pad to TPU
    friendly shapes, stack the two chains, cast MXU operands to bf16."""
    x_a, x_b = feats["A"], feats["B"]
    n_a, in_feats = x_a.shape
    n_b = x_b.shape[0]
    hid = params["w1_bel"].shape[1]
    bel_out = params["w2_bel"].shape[1]
    inc_out = params["w2_inc"].shape[1]

    a_bel_norm = normalize_adj(adj_bel)   # [n_b, n_a]
    a_inc_norm = normalize_adj(adj_inc)   # [n_a, n_b]

    # Square node padding: both chains' adjacencies share ONE stacked array
    # (layer-2 adjacency of chain i == layer-1 adjacency of chain 1-i), which
    # is what makes the HBM de-dup possible.  At scale, pad to the row-tile
    # multiple so the layer-2 row grid divides evenly.
    n_max = max(n_a, n_b)
    n_pad = _round_up(n_max, SUBLANE) if n_max <= 512 else _round_up(n_max, 512)
    fin_pad = _round_up(in_feats, LANE)
    hid_pad = _round_up(hid, LANE)
    out_pad = _round_up(max(bel_out, inc_out), LANE)
    bias_pad = max(hid_pad, out_pad)

    bf16 = jnp.bfloat16
    # chain 0: x_B --inc--> h_A --bel--> out_B
    # chain 1: x_A --bel--> h_B --inc--> out_A
    # adj_stack[i] = layer-1 adjacency of chain i; layer 2 uses adj_stack[1-i].
    adj_stack = jnp.stack([_pad2(a_inc_norm, n_pad, n_pad, bf16),
                           _pad2(a_bel_norm, n_pad, n_pad, bf16)])
    xs = jnp.stack([_pad2(x_b, n_pad, fin_pad, bf16),
                    _pad2(x_a, n_pad, fin_pad, bf16)])
    w1 = jnp.stack([_pad2(params["w1_inc"], fin_pad, hid_pad, bf16),
                    _pad2(params["w1_bel"], fin_pad, hid_pad, bf16)])
    w2 = jnp.stack([_pad2(params["w2_bel"], hid_pad, out_pad, bf16),
                    _pad2(params["w2_inc"], hid_pad, out_pad, bf16)])

    def bias_tile(b1, b2):
        t = jnp.zeros((SUBLANE, bias_pad), jnp.float32)
        t = t.at[0, : b1.shape[0]].set(b1.astype(jnp.float32))
        t = t.at[1, : b2.shape[0]].set(b2.astype(jnp.float32))
        return t

    bias = jnp.stack([bias_tile(params["b1_inc"], params["b2_bel"]),
                      bias_tile(params["b1_bel"], params["b2_inc"])])

    arrays = dict(adj_stack=adj_stack, xs=xs, w1=w1, w2=w2, bias=bias)
    meta = dict(n_a=n_a, n_b=n_b, bel_out=bel_out, inc_out=inc_out)
    return arrays, meta


@jax.jit
def _rgcn_padded_forward(adj_stack, xs, w1, w2, bias):
    _, n_pad, _ = adj_stack.shape
    fin_pad = xs.shape[2]
    hid_pad = w1.shape[2]
    out_pad = w2.shape[2]
    bias_pad = bias.shape[2]

    # Destination-row tiling for layer 2 / output (single tile at toy sizes).
    row_tile = n_pad if n_pad <= 512 else 512
    assert n_pad % row_tile == 0
    n_row_tiles = n_pad // row_tile

    kernel = functools.partial(_rgcn_chain_kernel,
                               hid_pad=hid_pad, out_pad=out_pad)

    return pl.pallas_call(
        kernel,
        out_shape=jax.ShapeDtypeStruct((2, n_pad, out_pad), jnp.float32),
        grid=(2, n_row_tiles),
        in_specs=[
            # layer-1 adjacency: chain i, full block, resident across row tiles
            pl.BlockSpec((1, n_pad, n_pad), lambda i, r: (i, 0, 0)),
            pl.BlockSpec((1, n_pad, fin_pad), lambda i, r: (i, 0, 0)),
            pl.BlockSpec((1, fin_pad, hid_pad), lambda i, r: (i, 0, 0)),
            # layer-2 adjacency: SAME HBM array (de-dup), chain 1-i, row-tiled
            pl.BlockSpec((1, row_tile, n_pad), lambda i, r: (1 - i, r, 0)),
            pl.BlockSpec((1, hid_pad, out_pad), lambda i, r: (i, 0, 0)),
            pl.BlockSpec((1, SUBLANE, bias_pad), lambda i, r: (i, 0, 0)),
        ],
        out_specs=pl.BlockSpec((1, row_tile, out_pad), lambda i, r: (i, r, 0)),
        scratch_shapes=[pltpu.VMEM((n_pad, out_pad), jnp.bfloat16)],
        compiler_params=pltpu.CompilerParams(
            dimension_semantics=("parallel", "arbitrary"),
            vmem_limit_bytes=64 * 1024 * 1024),
    )(adj_stack, xs, w1, adj_stack, w2, bias)


def rgcn_forward(arrays, meta):
    out = _rgcn_padded_forward(arrays["adj_stack"], arrays["xs"], arrays["w1"],
                               arrays["w2"], arrays["bias"])
    return {"A": out[1, :meta["n_a"], :meta["inc_out"]],
            "B": out[0, :meta["n_b"], :meta["bel_out"]]}


# ------------------------ pure-JAX reference (spec) ------------------------ #
def _ref_graph_conv(a_norm, x, w, b, apply_relu=False):
    y = a_norm @ (x @ w) + b[None, :]
    return jnp.maximum(y, 0.0) if apply_relu else y


def _ref_forward(a_bel_norm, a_inc_norm, feats, p):
    h_b = _ref_graph_conv(a_bel_norm, feats["A"], p["w1_bel"], p["b1_bel"], True)
    h_a = _ref_graph_conv(a_inc_norm, feats["B"], p["w1_inc"], p["b1_inc"], True)
    return {
        "A": _ref_graph_conv(a_inc_norm, h_b, p["w2_inc"], p["b2_inc"]),
        "B": _ref_graph_conv(a_bel_norm, h_a, p["w2_bel"], p["b2_bel"]),
    }


# --------------------------------- main ------------------------------------ #
if __name__ == "__main__":
    in_feats, hid_feats, bel_out_feats, inc_out_feats = 8, 32, 16, 8
    n_a, n_b = 16, 12

    key = jax.random.PRNGKey(0)
    keys = jax.random.split(key, 12)

    # deterministic synthetic graph: 'belongs_to' edges A->B, 'including' B->A
    adj_bel = (jax.random.uniform(keys[0], (n_a, n_b)) < 0.35).astype(jnp.float32)
    adj_inc = (jax.random.uniform(keys[1], (n_b, n_a)) < 0.35).astype(jnp.float32)

    # deterministic parameter init (Glorot-style scale); small nonzero biases
    # to exercise the bias path.
    def glorot(k, fan_in, fan_out):
        s = (6.0 / (fan_in + fan_out)) ** 0.5
        return jax.random.uniform(k, (fan_in, fan_out), jnp.float32, -s, s)

    params = {
        "w1_bel": glorot(keys[2], in_feats, hid_feats),
        "b1_bel": 0.1 * jax.random.normal(keys[8], (hid_feats,), jnp.float32),
        "w1_inc": glorot(keys[3], in_feats, hid_feats),
        "b1_inc": 0.1 * jax.random.normal(keys[9], (hid_feats,), jnp.float32),
        "w2_bel": glorot(keys[4], hid_feats, bel_out_feats),
        "b2_bel": 0.1 * jax.random.normal(keys[10], (bel_out_feats,), jnp.float32),
        "w2_inc": glorot(keys[5], hid_feats, inc_out_feats),
        "b2_inc": 0.1 * jax.random.normal(keys[11], (inc_out_feats,), jnp.float32),
    }

    feats = {
        "A": jax.random.normal(keys[6], (n_a, in_feats), jnp.float32),
        "B": jax.random.normal(keys[7], (n_b, in_feats), jnp.float32),
    }

    # One-time setup (padding / stacking / bf16 cast hoisted out of hot path).
    arrays, meta = prepare_inputs(adj_bel, adj_inc, feats, params)

    out = rgcn_forward(arrays, meta)
    out = jax.block_until_ready(out)

    # correctness check vs pure-JAX f32 reference (kernel uses bf16 MXU
    # operands with f32 accumulation and reassociates layer 1 as (A@X)@W,
    # hence the looser tolerance)
    a_bel_norm = normalize_adj(adj_bel)
    a_inc_norm = normalize_adj(adj_inc)
    ref = _ref_forward(a_bel_norm, a_inc_norm, feats, params)
    assert out["A"].shape == (n_a, inc_out_feats)
    assert out["B"].shape == (n_b, bel_out_feats)
    for k in ("A", "B"):
        assert jnp.allclose(out[k], ref[k], atol=3e-2, rtol=3e-2), k

    print("KERNEL_OK")
</pallas_src>

<mosaic_0001>
module attributes {stable_mosaic.version = 11 : i64} {
  func.func @_rgcn_chain_kernel(%arg0: i32, %arg1: i32, %arg2: memref<1x16x16xbf16, #tpu.memory_space<vmem>>, %arg3: memref<1x16x128xbf16, #tpu.memory_space<vmem>>, %arg4: memref<1x128x128xbf16, #tpu.memory_space<vmem>>, %arg5: memref<1x16x16xbf16, #tpu.memory_space<vmem>>, %arg6: memref<1x128x128xbf16, #tpu.memory_space<vmem>>, %arg7: memref<1x8x128xf32, #tpu.memory_space<vmem>>, %arg8: memref<1x16x128xf32, #tpu.memory_space<vmem>>, %arg9: memref<16x128xbf16, #tpu.memory_space<vmem>>) attributes {dimension_semantics = [#tpu.dimension_semantics<parallel>, #tpu.dimension_semantics<arbitrary>], iteration_bounds = array<i64: 2, 1>, scalar_prefetch = 0 : i64, scratch_operands = 1 : i64, tpu.core_type = #tpu.core_type<tc>, window_params = [{transform_indices = @transform_0, window_bounds = array<i64: 1, 16, 16>}, {transform_indices = @transform_1, window_bounds = array<i64: 1, 16, 128>}, {transform_indices = @transform_2, window_bounds = array<i64: 1, 128, 128>}, {transform_indices = @transform_3, window_bounds = array<i64: 1, 16, 16>}, {transform_indices = @transform_4, window_bounds = array<i64: 1, 128, 128>}, {transform_indices = @transform_5, window_bounds = array<i64: 1, 8, 128>}, {transform_indices = @transform_6, window_bounds = array<i64: 1, 16, 128>}]} {
    %c0_i32 = arith.constant 0 : i32
    %0 = arith.cmpi eq, %arg1, %c0_i32 : i32
    %1 = arith.extui %0 : i1 to i32
    %c0_i32_0 = arith.constant 0 : i32
    %2 = arith.cmpi ne, %1, %c0_i32_0 : i32
    scf.if %2 {
      %c0_11 = arith.constant 0 : index
      %c0_12 = arith.constant 0 : index
      %c0_13 = arith.constant 0 : index
      %15 = vector.load %arg7[%c0_11, %c0_12, %c0_13] : memref<1x8x128xf32, #tpu.memory_space<vmem>>, vector<1x8x128xf32>
      %16 = vector.shape_cast %15 : vector<1x8x128xf32> to vector<8x128xf32>
      %17 = vector.extract_strided_slice %16 {offsets = [0, 0], sizes = [1, 128], strides = [1, 1]} : vector<8x128xf32> to vector<1x128xf32>
      %c0_14 = arith.constant 0 : index
      %c0_15 = arith.constant 0 : index
      %c0_16 = arith.constant 0 : index
      %18 = vector.load %arg2[%c0_14, %c0_15, %c0_16] : memref<1x16x16xbf16, #tpu.memory_space<vmem>>, vector<1x16x16xbf16>
      %19 = vector.shape_cast %18 : vector<1x16x16xbf16> to vector<16x16xbf16>
      %c0_17 = arith.constant 0 : index
      %c0_18 = arith.constant 0 : index
      %c0_19 = arith.constant 0 : index
      %20 = vector.load %arg3[%c0_17, %c0_18, %c0_19] : memref<1x16x128xbf16, #tpu.memory_space<vmem>>, vector<1x16x128xbf16>
      %21 = vector.shape_cast %20 : vector<1x16x128xbf16> to vector<16x128xbf16>
      %cst_20 = arith.constant dense<0.000000e+00> : vector<16x128xf32>
      %22 = tpu.matmul %19, %21, %cst_20 {dimension_numbers = #tpu.dot_dimension_numbers<[1], [0], [0], [1], [0, 0, 1, 1], [], []>} : vector<16x16xbf16>, vector<16x128xbf16>, vector<16x128xf32> -> vector<16x128xf32>
      %23 = arith.truncf %22 : vector<16x128xf32> to vector<16x128xbf16>
      %c0_21 = arith.constant 0 : index
      %c0_22 = arith.constant 0 : index
      %c0_23 = arith.constant 0 : index
      %24 = vector.load %arg4[%c0_21, %c0_22, %c0_23] : memref<1x128x128xbf16, #tpu.memory_space<vmem>>, vector<1x128x128xbf16>
      %25 = vector.shape_cast %24 : vector<1x128x128xbf16> to vector<128x128xbf16>
      %cst_24 = arith.constant dense<0.000000e+00> : vector<16x128xf32>
      %26 = tpu.matmul %23, %25, %cst_24 {dimension_numbers = #tpu.dot_dimension_numbers<[1], [0], [0], [1], [0, 0, 1, 1], [], []>} : vector<16x128xbf16>, vector<128x128xbf16>, vector<16x128xf32> -> vector<16x128xf32>
      %27 = vector.broadcast %17 : vector<1x128xf32> to vector<16x128xf32>
      %28 = arith.addf %26, %27 : vector<16x128xf32>
      %cst_25 = arith.constant 0.000000e+00 : f32
      %29 = vector.broadcast %cst_25 : f32 to vector<16x128xf32>
      %30 = arith.maximumf %28, %29 : vector<16x128xf32>
      %31 = arith.truncf %30 : vector<16x128xf32> to vector<16x128xbf16>
      %c0_26 = arith.constant 0 : index
      %c0_27 = arith.constant 0 : index
      %c0_28 = arith.constant 0 : index
      %32 = vector.load %arg6[%c0_26, %c0_27, %c0_28] : memref<1x128x128xbf16, #tpu.memory_space<vmem>>, vector<1x128x128xbf16>
      %33 = vector.shape_cast %32 : vector<1x128x128xbf16> to vector<128x128xbf16>
      %cst_29 = arith.constant dense<0.000000e+00> : vector<16x128xf32>
      %34 = tpu.matmul %31, %33, %cst_29 {dimension_numbers = #tpu.dot_dimension_numbers<[1], [0], [0], [1], [0, 0, 1, 1], [], []>} : vector<16x128xbf16>, vector<128x128xbf16>, vector<16x128xf32> -> vector<16x128xf32>
      %35 = arith.truncf %34 : vector<16x128xf32> to vector<16x128xbf16>
      %c0_30 = arith.constant 0 : index
      %c0_31 = arith.constant 0 : index
      %36 = vector.load %arg9[%c0_30, %c0_31] : memref<16x128xbf16, #tpu.memory_space<vmem>>, vector<16x128xbf16>
      tpu.vector_store %arg9[%c0_30, %c0_31], %35 {strides = array<i32>} : memref<16x128xbf16, #tpu.memory_space<vmem>>, vector<16x128xbf16>,
    } else {
    }
    %c0 = arith.constant 0 : index
    %c0_1 = arith.constant 0 : index
    %c0_2 = arith.constant 0 : index
    %3 = vector.load %arg7[%c0, %c0_1, %c0_2] : memref<1x8x128xf32, #tpu.memory_space<vmem>>, vector<1x8x128xf32>
    %4 = vector.shape_cast %3 : vector<1x8x128xf32> to vector<8x128xf32>
    %5 = vector.extract_strided_slice %4 {offsets = [1, 0], sizes = [1, 128], strides = [1, 1]} : vector<8x128xf32> to vector<1x128xf32>
    %c0_3 = arith.constant 0 : index
    %c0_4 = arith.constant 0 : index
    %c0_5 = arith.constant 0 : index
    %6 = vector.load %arg5[%c0_3, %c0_4, %c0_5] : memref<1x16x16xbf16, #tpu.memory_space<vmem>>, vector<1x16x16xbf16>
    %7 = vector.shape_cast %6 : vector<1x16x16xbf16> to vector<16x16xbf16>
    %c0_6 = arith.constant 0 : index
    %c0_7 = arith.constant 0 : index
    %8 = vector.load %arg9[%c0_6, %c0_7] : memref<16x128xbf16, #tpu.memory_space<vmem>>, vector<16x128xbf16>
    %cst = arith.constant dense<0.000000e+00> : vector<16x128xf32>
    %9 = tpu.matmul %7, %8, %cst {dimension_numbers = #tpu.dot_dimension_numbers<[1], [0], [0], [1], [0, 0, 1, 1], [], []>} : vector<16x16xbf16>, vector<16x128xbf16>, vector<16x128xf32> -> vector<16x128xf32>
    %10 = vector.broadcast %5 : vector<1x128xf32> to vector<16x128xf32>
    %11 = arith.addf %9, %10 : vector<16x128xf32>
    %c0_8 = arith.constant 0 : index
    %c0_9 = arith.constant 0 : index
    %c0_10 = arith.constant 0 : index
    %12 = vector.load %arg8[%c0_8, %c0_9, %c0_10] : memref<1x16x128xf32, #tpu.memory_space<vmem>>, vector<1x16x128xf32>
    %13 = vector.shape_cast %12 : vector<1x16x128xf32> to vector<16x128xf32>
    %14 = vector.shape_cast %11 : vector<16x128xf32> to vector<1x16x128xf32>
    tpu.vector_store %arg8[%c0_8, %c0_9, %c0_10], %14 {strides = array<i32>} : memref<1x16x128xf32, #tpu.memory_space<vmem>>, vector<1x16x128xf32>,
    return
  }
  func.func @transform_0(%arg0: i32, %arg1: i32) -> (i32, i32, i32) {
    %c0_i32 = arith.constant 0 : i32
    %c0_i32_0 = arith.constant 0 : i32
    %c0_i32_1 = arith.constant 0 : i32
    return %arg0, %c0_i32, %c0_i32_0 : i32, i32, i32
  }
  func.func @transform_1(%arg0: i32, %arg1: i32) -> (i32, i32, i32) {
    %c0_i32 = arith.constant 0 : i32
    %c0_i32_0 = arith.constant 0 : i32
    %c0_i32_1 = arith.constant 0 : i32
    return %arg0, %c0_i32, %c0_i32_0 : i32, i32, i32
  }
  func.func @transform_2(%arg0: i32, %arg1: i32) -> (i32, i32, i32) {
    %c0_i32 = arith.constant 0 : i32
    %c0_i32_0 = arith.constant 0 : i32
    %c0_i32_1 = arith.constant 0 : i32
    return %arg0, %c0_i32, %c0_i32_0 : i32, i32, i32
  }
  func.func @transform_3(%arg0: i32, %arg1: i32) -> (i32, i32, i32) {
    %c1_i32 = arith.constant 1 : i32
    %0 = arith.subi %c1_i32, %arg0 : i32
    %c0_i32 = arith.constant 0 : i32
    %c0_i32_0 = arith.constant 0 : i32
    return %0, %arg1, %c0_i32 : i32, i32, i32
  }
  func.func @transform_4(%arg0: i32, %arg1: i32) -> (i32, i32, i32) {
    %c0_i32 = arith.constant 0 : i32
    %c0_i32_0 = arith.constant 0 : i32
    %c0_i32_1 = arith.constant 0 : i32
    return %arg0, %c0_i32, %c0_i32_0 : i32, i32, i32
  }
  func.func @transform_5(%arg0: i32, %arg1: i32) -> (i32, i32, i32) {
    %c0_i32 = arith.constant 0 : i32
    %c0_i32_0 = arith.constant 0 : i32
    %c0_i32_1 = arith.constant 0 : i32
    return %arg0, %c0_i32, %c0_i32_0 : i32, i32, i32
  }
  func.func @transform_6(%arg0: i32, %arg1: i32) -> (i32, i32, i32) {
    %c0_i32 = arith.constant 0 : i32
    %c0_i32_0 = arith.constant 0 : i32
    return %arg0, %arg1, %c0_i32 : i32, i32, i32
  }
}

</mosaic_0001>

<llo_original>
// kernel: _rgcn_padded_forward.1
$region0: #{_rgcn_padded_forward.1}
  #allocation0 [shape = 'u32[]', space=smem, size = 0x4, offset = 0x4, fixed_abs, tag = 'smem constant byte address 0x4 - core index']
  #allocation1 [shape = 'u32[72,128]{1,0:T(1,128)}', space=vmem, size = 0x9000, scoped, tag = 'internal scratch']
  #allocation2 [shape = 'bf16[16,128]{1,0:T(8,128)(2,1)}', space=vmem, size = 0x1000, scoped, tag = 'scratch operand']
  %s0 = inlined_call_operand.hbm [shape: bf16[2,16,16], index: 0, kind: input, shape index: {}, may-alias: {0,3}]
  %s1 = inlined_call_operand.hbm [shape: bf16[2,16,128], index: 1, kind: input, shape index: {}]
  %s2 = inlined_call_operand.hbm [shape: bf16[2,128,128], index: 2, kind: input, shape index: {}]
  %s3 = inlined_call_operand.hbm [shape: bf16[2,16,16], index: 3, kind: input, shape index: {}, may-alias: {0,3}]
  %s4 = inlined_call_operand.hbm [shape: bf16[2,128,128], index: 4, kind: input, shape index: {}]
  %s5 = inlined_call_operand.hbm [shape: f32[2,8,128], index: 5, kind: input, shape index: {}]
  %s6 = inlined_call_operand.hbm [shape: f32[2,16,128], index: 6, kind: output, shape index: {}]
  %s7 = sld [smem:[#allocation0]]
  $region85: #{_rgcn_padded_forward.1} parent=0
    _
  %s9 = ssub.s32 1, %s7
  %s10 = scalar_select 0, %s9, %s7
  $region1: #{_rgcn_padded_forward.1} parent=0
    #allocation3 [shape = 'u8[8192]{0}', space=vmem, size = 0x2000, scoped, tag = 'input window, operand 0']
    #allocation4 [shape = 's32[2]{0}', space=sflag, size = 0x8, scoped, tag = 'scoped memory for _rgcn_padded_forward.1']
    #allocation5 [shape = 's32[2]{0}', space=sflag, size = 0x8, scoped, tag = 'scoped memory for _rgcn_padded_forward.1']
    #allocation6 [shape = 'u8[8192]{0}', space=vmem, size = 0x2000, scoped, tag = 'input window, operand 1']
    #allocation7 [shape = 's32[2]{0}', space=sflag, size = 0x8, scoped, tag = 'scoped memory for _rgcn_padded_forward.1']
    #allocation8 [shape = 'u8[65536]{0}', space=vmem, size = 0x10000, scoped, tag = 'input window, operand 2']
    #allocation9 [shape = 'u8[8192]{0}', space=vmem, size = 0x2000, scoped, tag = 'input window, operand 3']
    #allocation10 [shape = 's32[2]{0}', space=sflag, size = 0x8, scoped, tag = 'scoped memory for _rgcn_padded_forward.1']
    #allocation11 [shape = 'u8[65536]{0}', space=vmem, size = 0x10000, scoped, tag = 'input window, operand 4']
    #allocation12 [shape = 'u8[8192]{0}', space=vmem, size = 0x2000, scoped, tag = 'input window, operand 5']
    #allocation13 [shape = 's32[2]{0}', space=sflag, size = 0x8, scoped, tag = 'scoped memory for _rgcn_padded_forward.1']
    #allocation14 [shape = 'u8[16384]{0}', space=vmem, size = 0x4000, scoped, tag = 'output window, operand 0']
    %11 = vsyncpa [#allocation4], 0
    %s12 = scalar_lea.sflag [#allocation4], 1
    %13 = vsyncpa %s12, 0
    %14 = vsyncpa [#allocation7], 0
    %s15 = scalar_lea.sflag [#allocation7], 1
    %16 = vsyncpa %s15, 0
    %17 = vsyncpa [#allocation10], 0
    %s18 = scalar_lea.sflag [#allocation10], 1
    %19 = vsyncpa %s18, 0
    %20 = vsyncpa [#allocation13], 0
    %s21 = scalar_lea.sflag [#allocation13], 1
    %22 = vsyncpa %s21, 0
    %23 = vsyncpa [#allocation5], 0
    %s24 = scalar_lea.sflag [#allocation5], 1
    %25 = vsyncpa %s24, 0
    loop: start=0, step=1, limit=4
    $region2: #{_rgcn_padded_forward.1} parent=1 // loop_pre_header
      _
    $region3: #{_rgcn_padded_forward.1} parent=1 // loop_header
      %s27 = sphi 0, %s31
      %p28 = scmp.ge.s32.totalorder %s27, 4
      %s34 = sphi 0, %s46
      %s35 = sphi 0, %s42
      %s36 = sphi 0, %s34
      %s37 = sphi 0, %s35
      %s38 = sphi 0, %s36
      %s39 = sphi 0, %s37
      %s49 = sphi 0, %s51
      %s52 = sphi 0, %s49
      %s53 = sphi 0, %s52
      %s69 = sphi 0, %s53
      %s75 = sphi 0, %s77
      %s78 = sphi 0, %s75
      %s79 = sphi 0, %s78
      %s95 = sphi 0, %s79
      %s101 = sphi 0, %s103
      %s104 = sphi 0, %s101
      %s105 = sphi 0, %s104
      %s121 = sphi 0, %s105
      %s131 = sphi 0, %s133
      %s134 = sphi 0, %s131
      %s135 = sphi 0, %s134
      %s151 = sphi 0, %s135
      %s157 = sphi 0, %s159
      %s160 = sphi 0, %s157
      %s161 = sphi 0, %s160
      %s177 = sphi 0, %s161
      %s183 = sphi 0, %s185
      %s186 = sphi 0, %s183
      %s187 = sphi 0, %s186
      %s203 = sphi 0, %s187
      %s211 = sphi 0, %s213
      %s214 = sphi 0, %s211
      %s215 = sphi 0, %s214
      %s231 = sphi 0, %s215
    $region4: #{_rgcn_padded_forward.1} parent=1 // loop_header_branch
      %30 = sbr.rel (%p28) target = $region8
    $region5: #{_rgcn_padded_forward.1} parent=1 // loop_body
      %s32 = ssub.s32 %s27, 1
      %s33 = ssub.s32 %s27, 2
      %s40 = sadd.s32 1, %s35
      %p41 = scmp.ge.s32.totalorder %s40, 1
      %s42 = scalar_select %p41, 0, %s40
      %s43 = sadd.s32 1, %s34
      %s44 = scalar_select %p41, %s43, %s34
      %p45 = scmp.ge.s32.totalorder %s44, 2
      %s46 = scalar_select %p45, 0, %s44
      %s47 = ssub.s32 %s34, %s46
      %p48 = scmp.eq.s32.totalorder %s47, 0
      %s50 = sadd.s32 %s49, 1
      %s51 = scalar_select %p48, %s49, %s50
      %p54 = pneg %p48
      %p55 = scmp.eq.s32.totalorder %s27, 1
      %p56 = por %p54, %p55
      %p57 = scmp.ne.s32.totalorder %s49, %s52
      %p58 = scmp.eq.s32.totalorder %s27, 0
      %p59 = por %p57, %p58
      %p60 = scmp.ne.s32.totalorder %s49, %s52
      %p61 = scmp.eq.s32.totalorder %s32, 1
      %p62 = por %p60, %p61
      %p63 = scmp.ne.s32.totalorder %s52, %s53
      %p64 = scmp.eq.s32.totalorder %s32, 0
      %p65 = por %p63, %p64
      %p66 = scmp.ne.s32.totalorder %s52, %s53
      %p67 = scmp.eq.s32.totalorder %s33, 1
      %p68 = por %p66, %p67
      %p70 = scmp.ne.s32.totalorder %s53, %s69
      %p71 = scmp.eq.s32.totalorder %s33, 0
      %p72 = por %p70, %p71
      %s73 = ssub.s32 %s34, %s46
      %p74 = scmp.eq.s32.totalorder %s73, 0
      %s76 = sadd.s32 %s75, 1
      %s77 = scalar_select %p74, %s75, %s76
      %p80 = pneg %p74
      %p81 = scmp.eq.s32.totalorder %s27, 1
      %p82 = por %p80, %p81
      %p83 = scmp.ne.s32.totalorder %s75, %s78
      %p84 = scmp.eq.s32.totalorder %s27, 0
      %p85 = por %p83, %p84
      %p86 = scmp.ne.s32.totalorder %s75, %s78
      %p87 = scmp.eq.s32.totalorder %s32, 1
      %p88 = por %p86, %p87
      %p89 = scmp.ne.s32.totalorder %s78, %s79
      %p90 = scmp.eq.s32.totalorder %s32, 0
      %p91 = por %p89, %p90
      %p92 = scmp.ne.s32.totalorder %s78, %s79
      %p93 = scmp.eq.s32.totalorder %s33, 1
      %p94 = por %p92, %p93
      %p96 = scmp.ne.s32.totalorder %s79, %s95
      %p97 = scmp.eq.s32.totalorder %s33, 0
      %p98 = por %p96, %p97
      %s99 = ssub.s32 %s34, %s46
      %p100 = scmp.eq.s32.totalorder %s99, 0
      %s102 = sadd.s32 %s101, 1
      %s103 = scalar_select %p100, %s101, %s102
      %p106 = pneg %p100
      %p107 = scmp.eq.s32.totalorder %s27, 1
      %p108 = por %p106, %p107
      %p109 = scmp.ne.s32.totalorder %s101, %s104
      %p110 = scmp.eq.s32.totalorder %s27, 0
      %p111 = por %p109, %p110
      %p112 = scmp.ne.s32.totalorder %s101, %s104
      %p113 = scmp.eq.s32.totalorder %s32, 1
      %p114 = por %p112, %p113
      %p115 = scmp.ne.s32.totalorder %s104, %s105
      %p116 = scmp.eq.s32.totalorder %s32, 0
      %p117 = por %p115, %p116
      %p118 = scmp.ne.s32.totalorder %s104, %s105
      %p119 = scmp.eq.s32.totalorder %s33, 1
      %p120 = por %p118, %p119
      %p122 = scmp.ne.s32.totalorder %s105, %s121
      %p123 = scmp.eq.s32.totalorder %s33, 0
      %p124 = por %p122, %p123
      %s125 = ssub.s32 1, %s34
      %s126 = ssub.s32 1, %s46
      %s127 = ssub.s32 %s125, %s126
      %s128 = ssub.s32 %s35, %s42
      %s129 = sor.u32 %s127, %s128
      %p130 = scmp.eq.s32.totalorder %s129, 0
      %s132 = sadd.s32 %s131, 1
      %s133 = scalar_select %p130, %s131, %s132
      %p136 = pneg %p130
      %p137 = scmp.eq.s32.totalorder %s27, 1
      %p138 = por %p136, %p137
      %p139 = scmp.ne.s32.totalorder %s131, %s134
      %p140 = scmp.eq.s32.totalorder %s27, 0
      %p141 = por %p139, %p140
      %p142 = scmp.ne.s32.totalorder %s131, %s134
      %p143 = scmp.eq.s32.totalorder %s32, 1
      %p144 = por %p142, %p143
      %p145 = scmp.ne.s32.totalorder %s134, %s135
      %p146 = scmp.eq.s32.totalorder %s32, 0
      %p147 = por %p145, %p146
      %p148 = scmp.ne.s32.totalorder %s134, %s135
      %p149 = scmp.eq.s32.totalorder %s33, 1
      %p150 = por %p148, %p149
      %p152 = scmp.ne.s32.totalorder %s135, %s151
      %p153 = scmp.eq.s32.totalorder %s33, 0
      %p154 = por %p152, %p153
      %s155 = ssub.s32 %s34, %s46
      %p156 = scmp.eq.s32.totalorder %s155, 0
      %s158 = sadd.s32 %s157, 1
      %s159 = scalar_select %p156, %s157, %s158
      %p162 = pneg %p156
      %p163 = scmp.eq.s32.totalorder %s27, 1
      %p164 = por %p162, %p163
      %p165 = scmp.ne.s32.totalorder %s157, %s160
      %p166 = scmp.eq.s32.totalorder %s27, 0
      %p167 = por %p165, %p166
      %p168 = scmp.ne.s32.totalorder %s157, %s160
      %p169 = scmp.eq.s32.totalorder %s32, 1
      %p170 = por %p168, %p169
      %p171 = scmp.ne.s32.totalorder %s160, %s161
      %p172 = scmp.eq.s32.totalorder %s32, 0
      %p173 = por %p171, %p172
      %p174 = scmp.ne.s32.totalorder %s160, %s161
      %p175 = scmp.eq.s32.totalorder %s33, 1
      %p176 = por %p174, %p175
      %p178 = scmp.ne.s32.totalorder %s161, %s177
      %p179 = scmp.eq.s32.totalorder %s33, 0
      %p180 = por %p178, %p179
      %s181 = ssub.s32 %s34, %s46
      %p182 = scmp.eq.s32.totalorder %s181, 0
      %s184 = sadd.s32 %s183, 1
      %s185 = scalar_select %p182, %s183, %s184
      %p188 = pneg %p182
      %p189 = scmp.eq.s32.totalorder %s27, 1
      %p190 = por %p188, %p189
      %p191 = scmp.ne.s32.totalorder %s183, %s186
      %p192 = scmp.eq.s32.totalorder %s27, 0
      %p193 = por %p191, %p192
      %p194 = scmp.ne.s32.totalorder %s183, %s186
      %p195 = scmp.eq.s32.totalorder %s32, 1
      %p196 = por %p194, %p195
      %p197 = scmp.ne.s32.totalorder %s186, %s187
      %p198 = scmp.eq.s32.totalorder %s32, 0
      %p199 = por %p197, %p198
      %p200 = scmp.ne.s32.totalorder %s186, %s187
      %p201 = scmp.eq.s32.totalorder %s33, 1
      %p202 = por %p200, %p201
      %p204 = scmp.ne.s32.totalorder %s187, %s203
      %p205 = scmp.eq.s32.totalorder %s33, 0
      %p206 = por %p204, %p205
      %s207 = ssub.s32 %s34, %s46
      %s208 = ssub.s32 %s35, %s42
      %s209 = sor.u32 %s207, %s208
      %p210 = scmp.eq.s32.totalorder %s209, 0
      %s212 = sadd.s32 %s211, 1
      %s213 = scalar_select %p210, %s211, %s212
      %p216 = pneg %p210
      %p217 = scmp.eq.s32.totalorder %s27, 1
      %p218 = por %p216, %p217
      %p219 = scmp.ne.s32.totalorder %s211, %s214
      %p220 = scmp.eq.s32.totalorder %s27, 0
      %p221 = por %p219, %p220
      %p222 = scmp.ne.s32.totalorder %s211, %s214
      %p223 = scmp.eq.s32.totalorder %s32, 1
      %p224 = por %p222, %p223
      %p225 = scmp.ne.s32.totalorder %s214, %s215
      %p226 = scmp.eq.s32.totalorder %s32, 0
      %p227 = por %p225, %p226
      %p228 = scmp.ne.s32.totalorder %s214, %s215
      %p229 = scmp.eq.s32.totalorder %s33, 1
      %p230 = por %p228, %p229
      %p232 = scmp.ne.s32.totalorder %s215, %s231
      %p233 = scmp.eq.s32.totalorder %s33, 0
      %p234 = por %p232, %p233
      %p235 = scmp.le.s32.totalorder 1, %s27
      %p236 = scmp.lt.s32.totalorder %s27, 3
      %p237 = pnand %p235, %p236
      %p238 = pneg %p237
      // Predicated region
      $region9: #{_rgcn_padded_forward.1} parent=5 // pred_check
        _
      $region10: #{_rgcn_padded_forward.1} parent=5 // pred_check_branch
        %240 = sbr.rel (%p237) target = $region12
      $region11: #{_rgcn_padded_forward.1} parent=5 // pred_region
        %s241 = ssub.s32 %s27, 1
      $region12: #{_rgcn_padded_forward.1} parent=5 // pred_fallthru
        _
      %p242 = scmp.lt.s32.totalorder %s27, 2
      // Predicated region
      $region13: #{_rgcn_padded_forward.1} parent=5 // pred_check
        %p243 = pneg %p242
      $region14: #{_rgcn_padded_forward.1} parent=5 // pred_check_branch
        %245 = sbr.rel (%p243) target = $region16
      $region15: #{_rgcn_padded_forward.1} parent=5 // pred_region
        // Predicated region
        $region17: #{_rgcn_padded_forward.1} parent=15 // pred_check
          %p246 = pneg %p59
        $region18: #{_rgcn_padded_forward.1} parent=15 // pred_check_branch
          %248 = sbr.rel (%p246) target = $region20
        $region19: #{_rgcn_padded_forward.1} parent=15 // pred_region
          %s249 = sand.u32 %s49, 1
          %s250 = scalar_lea.sflag [#allocation4], %s249
          %s251 = sand.u32 %s49, 1
          %s252 = smul.addr %s251, 8
          %s253 = scalar_lea.vmem [#allocation3], %s252
          %255 = vsyncadd %s250, 0
          %s256 = smul.addr %s34, 2
          %s257 = smul.addr %s256, 4
          %s258 = scalar_lea.hbm %s0, %s257
          %s259 = sshll.u32 %s258, 4
          %s260 = int_to_ptr.hbm [resolvable:$true] %s259
          %s261 = sshll.u32 %s253, 4
          %s262 = int_to_ptr.vmem [resolvable:$true] %s261
          %267 = dma.hbm_to_vmem [thread:$0]  %s260, 128, %s262, %s250, 64, 64, 4
        $region20: #{_rgcn_padded_forward.1} parent=15 // pred_fallthru
          _
        // Predicated region
        $region21: #{_rgcn_padded_forward.1} parent=15 // pred_check
          %p268 = pneg %p85
        $region22: #{_rgcn_padded_forward.1} parent=15 // pred_check_branch
          %270 = sbr.rel (%p268) target = $region24
        $region23: #{_rgcn_padded_forward.1} parent=15 // pred_region
          %s271 = sand.u32 %s27, 1
          %s272 = scalar_lea.sflag [#allocation7], %s271
          %s273 = sand.u32 %s75, 1
          %s274 = smul.addr %s273, 8
          %s275 = scalar_lea.vmem [#allocation6], %s274
          %277 = vsyncadd %s272, 0
          %s278 = smul.addr %s34, 2
          %s279 = smul.addr %s278, 4
          %s280 = scalar_lea.hbm %s1, %s279
          %s281 = sshll.u32 %s280, 4
          %s282 = int_to_ptr.hbm [resolvable:$true] %s281
          %s283 = sshll.u32 %s275, 4
          %s284 = int_to_ptr.vmem [resolvable:$true] %s283
          %289 = dma.hbm_to_vmem [thread:$0]  %s282, 128, %s284, %s272, 64, 64, 4
        $region24: #{_rgcn_padded_forward.1} parent=15 // pred_fallthru
          _
        // Predicated region
        $region25: #{_rgcn_padded_forward.1} parent=15 // pred_check
          %p290 = pneg %p111
        $region26: #{_rgcn_padded_forward.1} parent=15 // pred_check_branch
          %292 = sbr.rel (%p290) target = $region28
        $region27: #{_rgcn_padded_forward.1} parent=15 // pred_region
          %s293 = sand.u32 %s27, 1
          %s294 = scalar_lea.sflag [#allocation7], %s293
          %s295 = sand.u32 %s101, 1
          %s296 = smul.addr %s295, 64
          %s297 = scalar_lea.vmem [#allocation8], %s296
          %299 = vsyncadd %s294, 0
          %s300 = smul.addr %s34, 16
          %s301 = smul.addr %s300, 4
          %s302 = scalar_lea.hbm %s2, %s301
          %s303 = sshll.u32 %s302, 4
          %s304 = int_to_ptr.hbm [resolvable:$true] %s303
          %s305 = sshll.u32 %s297, 4
          %s306 = int_to_ptr.vmem [resolvable:$true] %s305
          %311 = dma.hbm_to_vmem [thread:$0]  %s304, 1024, %s306, %s294, 64, 64, 4
        $region28: #{_rgcn_padded_forward.1} parent=15 // pred_fallthru
          _
        // Predicated region
        $region29: #{_rgcn_padded_forward.1} parent=15 // pred_check
          %p312 = pneg %p141
        $region30: #{_rgcn_padded_forward.1} parent=15 // pred_check_branch
          %314 = sbr.rel (%p312) target = $region32
        $region31: #{_rgcn_padded_forward.1} parent=15 // pred_region
          %s315 = sand.u32 %s27, 1
          %s316 = scalar_lea.sflag [#allocation10], %s315
          %s317 = sand.u32 %s131, 1
          %s318 = smul.addr %s317, 8
          %s319 = scalar_lea.vmem [#allocation9], %s318
          %s320 = ssub.s32 1, %s34
          %s321 = smul.u32 2, %s35
          %323 = vsyncadd %s316, 0
          %s324 = smul.addr %s320, 2
          %s325 = sadd.s32 %s321, %s324
          %s326 = smul.addr %s325, 4
          %s327 = scalar_lea.hbm %s3, %s326
          %s328 = sshll.u32 %s327, 4
          %s329 = int_to_ptr.hbm [resolvable:$true] %s328
          %s330 = sshll.u32 %s319, 4
          %s331 = int_to_ptr.vmem [resolvable:$true] %s330
          %336 = dma.hbm_to_vmem [thread:$0]  %s329, 128, %s331, %s316, 64, 64, 4
        $region32: #{_rgcn_padded_forward.1} parent=15 // pred_fallthru
          _
        // Predicated region
        $region33: #{_rgcn_padded_forward.1} parent=15 // pred_check
          %p337 = pneg %p167
        $region34: #{_rgcn_padded_forward.1} parent=15 // pred_check_branch
          %339 = sbr.rel (%p337) target = $region36
        $region35: #{_rgcn_padded_forward.1} parent=15 // pred_region
          %s340 = sand.u32 %s27, 1
          %s341 = scalar_lea.sflag [#allocation10], %s340
          %s342 = sand.u32 %s157, 1
          %s343 = smul.addr %s342, 64
          %s344 = scalar_lea.vmem [#allocation11], %s343
          %346 = vsyncadd %s341, 0
          %s347 = smul.addr %s34, 16
          %s348 = smul.addr %s347, 4
          %s349 = scalar_lea.hbm %s4, %s348
          %s350 = sshll.u32 %s349, 4
          %s351 = int_to_ptr.hbm [resolvable:$true] %s350
          %s352 = sshll.u32 %s344, 4
          %s353 = int_to_ptr.vmem [resolvable:$true] %s352
          %358 = dma.hbm_to_vmem [thread:$0]  %s351, 1024, %s353, %s341, 64, 64, 4
        $region36: #{_rgcn_padded_forward.1} parent=15 // pred_fallthru
          _
        // Predicated region
        $region37: #{_rgcn_padded_forward.1} parent=15 // pred_check
          %p359 = pneg %p193
        $region38: #{_rgcn_padded_forward.1} parent=15 // pred_check_branch
          %361 = sbr.rel (%p359) target = $region40
        $region39: #{_rgcn_padded_forward.1} parent=15 // pred_region
          %s362 = sand.u32 %s183, 1
          %s363 = scalar_lea.sflag [#allocation13], %s362
          %s364 = sand.u32 %s183, 1
          %s365 = smul.addr %s364, 8
          %s366 = scalar_lea.vmem [#allocation12], %s365
          %368 = vsyncadd %s363, 0
          %s369 = smul.addr %s34, 8
          %s370 = scalar_lea.hbm %s5, %s369
          %s372 = sshll.u32 %s370, 4
          %s373 = int_to_ptr.hbm [resolvable:$true] %s372
          %s374 = sshll.u32 %s366, 4
          %s375 = int_to_ptr.vmem [resolvable:$true] %s374
          %377 = dma.hbm_to_vmem [thread:$0]  %s373, 128, %s375, %s363
        $region40: #{_rgcn_padded_forward.1} parent=15 // pred_fallthru
          _
      $region16: #{_rgcn_padded_forward.1} parent=5 // pred_fallthru
        _
      %p378 = scmp.le.s32.totalorder 1, %s27
      %p379 = scmp.lt.s32.totalorder %s27, 3
      %p380 = pnand %p378, %p379
      %p381 = pneg %p380
      // Predicated region
      $region41: #{_rgcn_padded_forward.1} parent=5 // pred_check
        _
      $region42: #{_rgcn_padded_forward.1} parent=5 // pred_check_branch
        %383 = sbr.rel (%p380) target = $region44
      $region43: #{_rgcn_padded_forward.1} parent=5 // pred_region
        %s384 = ssub.s32 %s27, 1
        %s385 = sand.u32 %s52, 1
        %s386 = scalar_lea.sflag [#allocation4], %s385
        %s387 = sand.u32 %s52, 1
        %s388 = smul.addr %s387, 8
        %s389 = scalar_lea.vmem [#allocation3], %s388
        // Predicated region
        $region45: #{_rgcn_padded_forward.1} parent=43 // pred_check
          %p390 = pneg %p65
        $region46: #{_rgcn_padded_forward.1} parent=43 // pred_check_branch
          %392 = sbr.rel (%p390) target = $region48
        $region47: #{_rgcn_padded_forward.1} parent=43 // pred_region
          %394 = dma.done %s386, 128
        $region48: #{_rgcn_padded_forward.1} parent=43 // pred_fallthru
          _
        %s395 = sand.u32 %s32, 1
        %s396 = scalar_lea.sflag [#allocation7], %s395
        %s397 = sand.u32 %s78, 1
        %s398 = smul.addr %s397, 8
        %s399 = scalar_lea.vmem [#allocation6], %s398
        // Predicated region
        $region49: #{_rgcn_padded_forward.1} parent=43 // pred_check
          %p400 = pneg %p91
        $region50: #{_rgcn_padded_forward.1} parent=43 // pred_check_branch
          %402 = sbr.rel (%p400) target = $region52
        $region51: #{_rgcn_padded_forward.1} parent=43 // pred_region
          %404 = dma.done %s396, 128
        $region52: #{_rgcn_padded_forward.1} parent=43 // pred_fallthru
          _
        %s405 = sand.u32 %s32, 1
        %s406 = scalar_lea.sflag [#allocation7], %s405
        %s407 = sand.u32 %s104, 1
        %s408 = smul.addr %s407, 64
        %s409 = scalar_lea.vmem [#allocation8], %s408
        // Predicated region
        $region53: #{_rgcn_padded_forward.1} parent=43 // pred_check
          %p410 = pneg %p117
        $region54: #{_rgcn_padded_forward.1} parent=43 // pred_check_branch
          %412 = sbr.rel (%p410) target = $region56
        $region55: #{_rgcn_padded_forward.1} parent=43 // pred_region
          %414 = dma.done %s406, 1024
        $region56: #{_rgcn_padded_forward.1} parent=43 // pred_fallthru
          _
        %s415 = sand.u32 %s32, 1
        %s416 = scalar_lea.sflag [#allocation10], %s415
        %s417 = sand.u32 %s134, 1
        %s418 = smul.addr %s417, 8
        %s419 = scalar_lea.vmem [#allocation9], %s418
        // Predicated region
        $region57: #{_rgcn_padded_forward.1} parent=43 // pred_check
          %p420 = pneg %p147
        $region58: #{_rgcn_padded_forward.1} parent=43 // pred_check_branch
          %422 = sbr.rel (%p420) target = $region60
        $region59: #{_rgcn_padded_forward.1} parent=43 // pred_region
          %424 = dma.done %s416, 128
        $region60: #{_rgcn_padded_forward.1} parent=43 // pred_fallthru
          _
        %s425 = sand.u32 %s32, 1
        %s426 = scalar_lea.sflag [#allocation10], %s425
        %s427 = sand.u32 %s160, 1
        %s428 = smul.addr %s427, 64
        %s429 = scalar_lea.vmem [#allocation11], %s428
        // Predicated region
        $region61: #{_rgcn_padded_forward.1} parent=43 // pred_check
          %p430 = pneg %p173
        $region62: #{_rgcn_padded_forward.1} parent=43 // pred_check_branch
          %432 = sbr.rel (%p430) target = $region64
        $region63: #{_rgcn_padded_forward.1} parent=43 // pred_region
          %434 = dma.done %s426, 1024
        $region64: #{_rgcn_padded_forward.1} parent=43 // pred_fallthru
          _
        %s435 = sand.u32 %s186, 1
        %s436 = scalar_lea.sflag [#allocation13], %s435
        %s437 = sand.u32 %s186, 1
        %s438 = smul.addr %s437, 8
        %s439 = scalar_lea.vmem [#allocation12], %s438
        // Predicated region
        $region65: #{_rgcn_padded_forward.1} parent=43 // pred_check
          %p440 = pneg %p199
        $region66: #{_rgcn_padded_forward.1} parent=43 // pred_check_branch
          %442 = sbr.rel (%p440) target = $region68
        $region67: #{_rgcn_padded_forward.1} parent=43 // pred_region
          %444 = dma.done %s436, 128
        $region68: #{_rgcn_padded_forward.1} parent=43 // pred_fallthru
          _
        %s445 = sand.u32 %s52, 1
        %s446 = scalar_lea.sflag [#allocation4], %s445
        %s447 = sand.u32 %s52, 1
        %s448 = smul.addr %s447, 8
        %s449 = scalar_lea.vmem [#allocation3], %s448
        %p450 = pneg %p65
        %p451 = pneg %p62
        %s452 = sand.u32 %s32, 1
        %s453 = scalar_lea.sflag [#allocation7], %s452
        %s454 = sand.u32 %s78, 1
        %s455 = smul.addr %s454, 8
        %s456 = scalar_lea.vmem [#allocation6], %s455
        %p457 = pneg %p91
        %p458 = pneg %p88
        %s459 = sand.u32 %s32, 1
        %s460 = scalar_lea.sflag [#allocation7], %s459
        %s461 = sand.u32 %s104, 1
        %s462 = smul.addr %s461, 64
        %s463 = scalar_lea.vmem [#allocation8], %s462
        %p464 = pneg %p117
        %p465 = pneg %p114
        %s466 = sand.u32 %s32, 1
        %s467 = scalar_lea.sflag [#allocation10], %s466
        %s468 = sand.u32 %s134, 1
        %s469 = smul.addr %s468, 8
        %s470 = scalar_lea.vmem [#allocation9], %s469
        %p471 = pneg %p147
        %p472 = pneg %p144
        %s473 = sand.u32 %s32, 1
        %s474 = scalar_lea.sflag [#allocation10], %s473
        %s475 = sand.u32 %s160, 1
        %s476 = smul.addr %s475, 64
        %s477 = scalar_lea.vmem [#allocation11], %s476
        %p478 = pneg %p173
        %p479 = pneg %p170
        %s480 = sand.u32 %s186, 1
        %s481 = scalar_lea.sflag [#allocation13], %s480
        %s482 = sand.u32 %s186, 1
        %s483 = smul.addr %s482, 8
        %s484 = scalar_lea.vmem [#allocation12], %s483
        %p485 = pneg %p199
        %p486 = pneg %p196
        %p487 = pneg %p227
        %p488 = pneg %p224
        %s489 = sand.u32 %s214, 1
        %s490 = scalar_lea.sflag [#allocation5], %s489
        %s491 = sand.u32 %s214, 1
        %s492 = smul.addr %s491, 16
        %s493 = scalar_lea.vmem [#allocation14], %s492
        %s494 = ssub.s32 1, %s36
        %s495 = smul.u32 2, %s37
        %s496 = smul.u32 2, %s37
        %p498 = scmp.eq.s32.totalorder %s37, 0
        // Predicated region
        $region69: #{_rgcn_padded_forward.1} parent=43 // pred_check
          %p499 = pneg %p498
        $region70: #{_rgcn_padded_forward.1} parent=43 // pred_check_branch
          %501 = sbr.rel (%p499) target = $region72
        $region71: #{_rgcn_padded_forward.1} parent=43 // pred_region
          %v502 = vld [vmem:[%s439] sm:$0xff]
          %v503 = vld [vmem:[%s389] sm:$0xf]
          %v504 = vld [vmem:[%s389 + $0x4] sm:$0xf]
          %v505 = vld [vmem:[%s399] sm:$0xf]
          %v506 = vld [vmem:[%s399 + $0x4] sm:$0xf]
          %v509 = vunpack.c.l.b16 %v503
          %v510 = vunpack.c.l.b16 %v504
          %v511 = vpack.c.b16 %v510, %v509
          %v514 = vunpack.c.l.b16 %v505
          %v515 = vunpack.c.l.b16 %v506
          %v516 = vpack.c.b16 %v515, %v514
          %vm518 = vcmask 130048
          %v520 = vsel %vm518, %v511, 0
          %522 = vmatpush.bf16.msra.mxu0 0
          %523 = vmatpush.bf16.msra.mxu0 0
          %524 = vmatpush.bf16.msra.mxu0 0
          %525 = vmatpush.bf16.msra.mxu0 0
          %526 = vmatpush.bf16.msra.mxu0 0
          %527 = vmatpush.bf16.msra.mxu0 0
          %528 = vmatpush.bf16.msra.mxu0 0
          %529 = vmatpush.bf16.msra.mxu0 %v516
          %530 = vmatmul.bf16.gmra.mxu0 %v520
          %v531 = vpop.f32.mrf.mxu0
          %v532 = vadd.f32 0.0, %v531
          %v533 = vpop.f32.mrf.mxu0
          %v534 = vadd.f32 0.0, %v533
          %535 = vdwg.mxu0
          %v536 = vpack.c.bf16 %v534, %v532
          %v537 = vld [vmem:[%s409] sm:$0xf]
          %v538 = vld [vmem:[%s409 + $0x4] sm:$0xf]
          %v539 = vld [vmem:[%s409 + $0x8] sm:$0xf]
          %v540 = vld [vmem:[%s409 + $0xc] sm:$0xf]
          %v541 = vld [vmem:[%s409 + $0x10] sm:$0xf]
          %v542 = vld [vmem:[%s409 + $0x14] sm:$0xf]
          %v543 = vld [vmem:[%s409 + $0x18] sm:$0xf]
          %v544 = vld [vmem:[%s409 + $0x1c] sm:$0xf]
          %v545 = vld [vmem:[%s409 + $0x20] sm:$0xf]
          %v546 = vld [vmem:[%s409 + $0x24] sm:$0xf]
          %v547 = vld [vmem:[%s409 + $0x28] sm:$0xf]
          %v548 = vld [vmem:[%s409 + $0x2c] sm:$0xf]
          %v549 = vld [vmem:[%s409 + $0x30] sm:$0xf]
          %v550 = vld [vmem:[%s409 + $0x34] sm:$0xf]
          %v551 = vld [vmem:[%s409 + $0x38] sm:$0xf]
          %v552 = vld [vmem:[%s409 + $0x3c] sm:$0xf]
          %v553 = vperm.slane %v502, 0
          %v570 = vunpack.c.l.b16 %v537
          %v571 = vunpack.c.l.b16 %v538
          %v572 = vunpack.c.l.b16 %v539
          %v573 = vunpack.c.l.b16 %v540
          %v574 = vunpack.c.l.b16 %v541
          %v575 = vunpack.c.l.b16 %v542
          %v576 = vunpack.c.l.b16 %v543
          %v577 = vunpack.c.l.b16 %v544
          %v578 = vunpack.c.l.b16 %v545
          %v579 = vunpack.c.l.b16 %v546
          %v580 = vunpack.c.l.b16 %v547
          %v581 = vunpack.c.l.b16 %v548
          %v582 = vunpack.c.l.b16 %v549
          %v583 = vunpack.c.l.b16 %v550
          %v584 = vunpack.c.l.b16 %v551
          %v585 = vunpack.c.l.b16 %v552
          %v586 = vpack.c.b16 %v571, %v570
          %v587 = vpack.c.b16 %v573, %v572
          %v588 = vpack.c.b16 %v575, %v574
          %v589 = vpack.c.b16 %v577, %v576
          %v590 = vpack.c.b16 %v579, %v578
          %v591 = vpack.c.b16 %v581, %v580
          %v592 = vpack.c.b16 %v583, %v582
          %v593 = vpack.c.b16 %v585, %v584
          %602 = vmatpush.bf16.msra.mxu0 %v593
          %603 = vmatpush.bf16.msra.mxu0 %v592
          %604 = vmatpush.bf16.msra.mxu0 %v591
          %605 = vmatpush.bf16.msra.mxu0 %v590
          %606 = vmatpush.bf16.msra.mxu0 %v589
          %607 = vmatpush.bf16.msra.mxu0 %v588
          %608 = vmatpush.bf16.msra.mxu0 %v587
          %609 = vmatpush.bf16.msra.mxu0 %v586
          %610 = vmatmul.bf16.gmra.mxu0 %v536
          %v611 = vpop.f32.mrf.mxu0
          %v612 = vadd.f32 %v553, %v611
          %v613 = vpop.f32.mrf.mxu0
          %v614 = vadd.f32 %v553, %v613
          %615 = vdwg.mxu0
          %v616 = vmax.f32 %v612, 0.0
          %v617 = vmax.f32 %v614, 0.0
          %v618 = vpack.c.bf16 %v617, %v616
          %v619 = vld [vmem:[%s429] sm:$0xf]
          %v620 = vld [vmem:[%s429 + $0x4] sm:$0xf]
          %v621 = vld [vmem:[%s429 + $0x8] sm:$0xf]
          %v622 = vld [vmem:[%s429 + $0xc] sm:$0xf]
          %v623 = vld [vmem:[%s429 + $0x10] sm:$0xf]
          %v624 = vld [vmem:[%s429 + $0x14] sm:$0xf]
          %v625 = vld [vmem:[%s429 + $0x18] sm:$0xf]
          %v626 = vld [vmem:[%s429 + $0x1c] sm:$0xf]
          %v627 = vld [vmem:[%s429 + $0x20] sm:$0xf]
          %v628 = vld [vmem:[%s429 + $0x24] sm:$0xf]
          %v629 = vld [vmem:[%s429 + $0x28] sm:$0xf]
          %v630 = vld [vmem:[%s429 + $0x2c] sm:$0xf]
          %v631 = vld [vmem:[%s429 + $0x30] sm:$0xf]
          %v632 = vld [vmem:[%s429 + $0x34] sm:$0xf]
          %v633 = vld [vmem:[%s429 + $0x38] sm:$0xf]
          %v634 = vld [vmem:[%s429 + $0x3c] sm:$0xf]
          %v651 = vunpack.c.l.b16 %v619
          %v652 = vunpack.c.l.b16 %v620
          %v653 = vunpack.c.l.b16 %v621
          %v654 = vunpack.c.l.b16 %v622
          %v655 = vunpack.c.l.b16 %v623
          %v656 = vunpack.c.l.b16 %v624
          %v657 = vunpack.c.l.b16 %v625
          %v658 = vunpack.c.l.b16 %v626
          %v659 = vunpack.c.l.b16 %v627
          %v660 = vunpack.c.l.b16 %v628
          %v661 = vunpack.c.l.b16 %v629
          %v662 = vunpack.c.l.b16 %v630
          %v663 = vunpack.c.l.b16 %v631
          %v664 = vunpack.c.l.b16 %v632
          %v665 = vunpack.c.l.b16 %v633
          %v666 = vunpack.c.l.b16 %v634
          %v667 = vpack.c.b16 %v652, %v651
          %v668 = vpack.c.b16 %v654, %v653
          %v669 = vpack.c.b16 %v656, %v655
          %v670 = vpack.c.b16 %v658, %v657
          %v671 = vpack.c.b16 %v660, %v659
          %v672 = vpack.c.b16 %v662, %v661
          %v673 = vpack.c.b16 %v664, %v663
          %v674 = vpack.c.b16 %v666, %v665
          %683 = vmatpush.bf16.msra.mxu0 %v674
          %684 = vmatpush.bf16.msra.mxu0 %v673
          %685 = vmatpush.bf16.msra.mxu0 %v672
          %686 = vmatpush.bf16.msra.mxu0 %v671
          %687 = vmatpush.bf16.msra.mxu0 %v670
          %688 = vmatpush.bf16.msra.mxu0 %v669
          %689 = vmatpush.bf16.msra.mxu0 %v668
          %690 = vmatpush.bf16.msra.mxu0 %v667
          %691 = vmatmul.bf16.gmra.mxu0 %v618
          %v692 = vpop.f32.mrf.mxu0
          %v693 = vadd.f32 0.0, %v692
          %v694 = vpop.f32.mrf.mxu0
          %v695 = vadd.f32 0.0, %v694
          %696 = vdwg.mxu0
          %v697 = vpack.c.bf16 %v693, %v693
          %v698 = vpack.c.bf16 %v695, %v695
          %699 = vst [vmem:[#allocation2] sm:$0xf] %v697
          %700 = vst [vmem:[#allocation2 + $0x4] sm:$0xf] %v698
        $region72: #{_rgcn_padded_forward.1} parent=43 // pred_fallthru
          _
        %v701 = vld [vmem:[%s439] sm:$0xff]
        %v702 = vld [vmem:[%s419] sm:$0xf]
        %v703 = vld [vmem:[%s419 + $0x4] sm:$0xf]
        %v704 = vld [vmem:[#allocation2] sm:$0xf]
        %v705 = vld [vmem:[#allocation2 + $0x4] sm:$0xf]
        %v706 = vperm.slane %v701, 1
        %v709 = vunpack.c.l.b16 %v702
        %v710 = vunpack.c.l.b16 %v703
        %v711 = vpack.c.b16 %v710, %v709
        %v714 = vunpack.c.l.b16 %v704
        %v715 = vunpack.c.l.b16 %v705
        %v716 = vpack.c.b16 %v715, %v714
        %vm718 = vcmask 130048
        %v720 = vsel %vm718, %v711, 0
        %722 = vmatpush.bf16.msra.mxu0 0
        %723 = vmatpush.bf16.msra.mxu0 0
        %724 = vmatpush.bf16.msra.mxu0 0
        %725 = vmatpush.bf16.msra.mxu0 0
        %726 = vmatpush.bf16.msra.mxu0 0
        %727 = vmatpush.bf16.msra.mxu0 0
        %728 = vmatpush.bf16.msra.mxu0 0
        %729 = vmatpush.bf16.msra.mxu0 %v716
        %730 = vmatmul.bf16.gmra.mxu0 %v720
        %v731 = vpop.f32.mrf.mxu0
        %v732 = vadd.f32 %v706, %v731
        %v733 = vpop.f32.mrf.mxu0
        %v734 = vadd.f32 %v706, %v733
        %735 = vdwg.mxu0
        %736 = vst [vmem:[%s493] sm:$0xff] %v732
        %737 = vst [vmem:[%s493 + $0x8] sm:$0xff] %v734
        %s738 = sand.u32 %s214, 1
        %s739 = scalar_lea.sflag [#allocation5], %s738
        %s740 = sand.u32 %s214, 1
        %s741 = smul.addr %s740, 16
        %s742 = scalar_lea.vmem [#allocation14], %s741
        // Predicated region
        $region73: #{_rgcn_padded_forward.1} parent=43 // pred_check
          %p743 = pneg %p224
        $region74: #{_rgcn_padded_forward.1} parent=43 // pred_check_branch
          %745 = sbr.rel (%p743) target = $region76
        $region75: #{_rgcn_padded_forward.1} parent=43 // pred_region
          %s746 = smul.u32 2, %s37
          %748 = vsyncadd %s739, 0
          %s749 = smul.addr %s36, 2
          %s750 = sadd.s32 %s746, %s749
          %s751 = smul.addr %s750, 8
          %s752 = scalar_lea.hbm %s6, %s751
          %s753 = sshll.u32 %s742, 4
          %s754 = int_to_ptr.vmem [resolvable:$true] %s753
          %s755 = sshll.u32 %s752, 4
          %s756 = int_to_ptr.hbm [resolvable:$true] %s755
          %761 = dma.vmem_to_hbm [thread:$0]  %s754, 256, %s756, %s739, 128, 128, 8
        $region76: #{_rgcn_padded_forward.1} parent=43 // pred_fallthru
          _
      $region44: #{_rgcn_padded_forward.1} parent=5 // pred_fallthru
        _
      %p762 = scmp.le.s32.totalorder 2, %s27
      // Predicated region
      $region77: #{_rgcn_padded_forward.1} parent=5 // pred_check
        %p763 = pneg %p762
      $region78: #{_rgcn_padded_forward.1} parent=5 // pred_check_branch
        %765 = sbr.rel (%p763) target = $region80
      $region79: #{_rgcn_padded_forward.1} parent=5 // pred_region
        %s766 = ssub.s32 %s27, 2
        // Predicated region
        $region81: #{_rgcn_padded_forward.1} parent=79 // pred_check
          %p767 = pneg %p230
        $region82: #{_rgcn_padded_forward.1} parent=79 // pred_check_branch
          %769 = sbr.rel (%p767) target = $region84
        $region83: #{_rgcn_padded_forward.1} parent=79 // pred_region
          %s770 = sand.u32 %s215, 1
          %s771 = scalar_lea.sflag [#allocation5], %s770
          %s772 = sand.u32 %s215, 1
          %s773 = smul.addr %s772, 16
          %s774 = scalar_lea.vmem [#allocation14], %s773
          %776 = dma.done %s771, 256
        $region84: #{_rgcn_padded_forward.1} parent=79 // pred_fallthru
          _
      $region80: #{_rgcn_padded_forward.1} parent=5 // pred_fallthru
        _
    $region6: #{_rgcn_padded_forward.1} parent=1 // loop_footer
      %s31 = sadd.s32 1, %s27
    $region7: #{_rgcn_padded_forward.1} parent=1 // loop_footer_branch
      %26 = sbr.rel target = $region3
    $region8: #{_rgcn_padded_forward.1} parent=1 // loop_exit
      _
    %777 = vsyncpa [#allocation4], 1
    %s778 = scalar_lea.sflag [#allocation4], 1
    %779 = vsyncpa %s778, 1
    %780 = vsyncpa [#allocation7], 1
    %s781 = scalar_lea.sflag [#allocation7], 1
    %782 = vsyncpa %s781, 1
    %783 = vsyncpa [#allocation10], 1
    %s784 = scalar_lea.sflag [#allocation10], 1
    %785 = vsyncpa %s784, 1
    %786 = vsyncpa [#allocation13], 1
    %s787 = scalar_lea.sflag [#allocation13], 1
    %788 = vsyncpa %s787, 1
    %789 = vsyncpa [#allocation5], 1
    %s790 = scalar_lea.sflag [#allocation5], 1
    %791 = vsyncpa %s790, 1

</llo_original>
